<compile_context>
chip_gen: v7x
topology: tpu7x:2x2x1
jax: 0.10.0
libtpu: 0.0.40
codegen_flags: <defaults>
</compile_context>

<pallas_src>
import functools

import jax
import jax.numpy as jnp
from jax.experimental import pallas as pl
from jax.experimental.pallas import tpu as pltpu


def _round_up(x, m):
    return ((x + m - 1) // m) * m


# ---------------------------------------------------------------------------
# Kernel: one GegenbauerKANLayer tile.
# ---------------------------------------------------------------------------
def _gegenbauer_layer_kernel(x_ref, coeff_ref, o_ref, g_ref, *, degree, alpha,
                             in_features):
    """y = einsum('bid,iod->bo', C(tanh(x)), coeffs) on one (TB, TO) tile.

    x_ref:     (TB, I)             f32 activation tile
    coeff_ref: ((degree+1)*I, TO)  bf16 coefficients, degree-major K layout
    o_ref:     (TB, TO)            f32 output tile
    g_ref:     (TB, (degree+1)*I)  f32 VMEM scratch holding the folded basis
    """
    nf = in_features
    x = jnp.tanh(x_ref[...].astype(jnp.float32))           # (TB, I), f32

    # Gegenbauer recurrence in f32 (three-term recurrences compound rounding;
    # only the MXU operands are cast to bf16 below). Each degree slab is written
    # into its K-segment of the scratch so a single matmul consumes all degrees.
    g_prev = jnp.ones_like(x)                               # C_0
    g_ref[:, 0:nf] = g_prev
    if degree >= 1:
        g_cur = (2.0 * alpha) * x                           # C_1
        g_ref[:, nf:2 * nf] = g_cur
        for n in range(1, degree):                          # statically unrolled
            g_next = ((2.0 * (n + alpha)) * x * g_cur
                      - (n + 2.0 * alpha - 1.0) * g_prev) * (1.0 / (n + 1.0))
            g_ref[:, (n + 1) * nf:(n + 2) * nf] = g_next
            g_prev, g_cur = g_cur, g_next

    # Degree folded into the contraction: one MXU matmul with K = (degree+1)*I,
    # bf16 operands, f32 accumulation.
    g = g_ref[...].astype(jnp.bfloat16)
    acc = jnp.dot(g, coeff_ref[...], preferred_element_type=jnp.float32)
    o_ref[...] = acc.astype(o_ref.dtype)


# ---------------------------------------------------------------------------
# Tile planning / VMEM budgeting.
# ---------------------------------------------------------------------------
_VMEM_FIT_BUDGET = 32 << 20    # bytes used to decide the tile plan
_VMEM_LIMIT_CAP = 48 << 20     # safe on v5e/v6e (128 MiB) and v7x (64 MiB)


def _layer_vmem_bytes(tb, to, in_features, degree):
    k = (degree + 1) * in_features
    coeff = 2 * k * to * 2            # bf16 coeff block, double-buffered
    x_tile = 2 * tb * in_features * 4  # f32 activation tile, double-buffered
    out_tile = 2 * tb * to * 4         # f32 output tile, double-buffered
    g_scratch = tb * k * 4             # f32 folded-basis scratch
    live = tb * k * 2 + tb * to * 4    # bf16 basis copy + f32 accumulator
    return coeff + x_tile + out_tile + g_scratch + live


def _plan_tiles(batch, in_features, out_features, degree):
    tb = min(512, _round_up(batch, 8))
    # Prefer full-O weight residency: coeffs are then DMA'd exactly once for the
    # whole grid and the tanh/recurrence is never recomputed per output tile.
    if _layer_vmem_bytes(tb, out_features, in_features, degree) <= _VMEM_FIT_BUDGET:
        return tb, _round_up(batch, tb), out_features, out_features
    # Otherwise tile O (lane-aligned), keeping the weight block as big as fits.
    o_pad = _round_up(out_features, 128)
    to = 128
    for cand in range(o_pad, 127, -128):
        if o_pad % cand == 0 and _layer_vmem_bytes(tb, cand, in_features,
                                                   degree) <= _VMEM_FIT_BUDGET:
            to = cand
            break
    while _layer_vmem_bytes(tb, to, in_features, degree) > _VMEM_FIT_BUDGET and tb > 8:
        tb = max(8, tb // 2)
    return tb, _round_up(batch, tb), to, o_pad


# ---------------------------------------------------------------------------
# Layer wrapper.
# ---------------------------------------------------------------------------
def gegenbauer_kan_layer(x, coeffs, *, degree, alpha):
    """x: (B, I) f32, coeffs: (degree+1, I, O) f32 -> (B, O) f32."""
    B, I = x.shape
    d1, i2, O = coeffs.shape
    assert d1 == degree + 1 and i2 == I, (coeffs.shape, (degree, I))

    TB, B_pad, TO, O_pad = _plan_tiles(B, I, O, degree)
    K = (degree + 1) * I

    # Degree-major (d, i) rows flatten (for free) to a lane-dense (K, O) MXU RHS;
    # bf16 halves the weight bytes streamed from HBM and held in VMEM.
    w = coeffs.reshape(K, O).astype(jnp.bfloat16)
    if O_pad != O:
        w = jnp.pad(w, ((0, 0), (0, O_pad - O)))
    if B_pad != B:
        x = jnp.pad(x, ((0, B_pad - B), (0, 0)))

    # o outermost, b innermost: the coeff block index is constant across the inner
    # batch sweep, so weights stay resident in VMEM (fetched once per o tile) and
    # only the (TB, I) activation tiles stream.
    grid = (O_pad // TO, B_pad // TB)

    kernel = functools.partial(_gegenbauer_layer_kernel, degree=degree,
                               alpha=alpha, in_features=I)

    vmem_limit = int(min(max(_layer_vmem_bytes(TB, TO, I, degree) + (8 << 20),
                             32 << 20), _VMEM_LIMIT_CAP))

    out = pl.pallas_call(
        kernel,
        out_shape=jax.ShapeDtypeStruct((B_pad, O_pad), jnp.float32),
        grid_spec=pltpu.PrefetchScalarGridSpec(
            num_scalar_prefetch=0,
            grid=grid,
            in_specs=[
                pl.BlockSpec((TB, I), lambda o, b: (b, 0)),
                pl.BlockSpec((K, TO), lambda o, b: (0, o)),
            ],
            out_specs=pl.BlockSpec((TB, TO), lambda o, b: (b, o)),
            scratch_shapes=[pltpu.VMEM((TB, K), jnp.float32)],
        ),
        compiler_params=pltpu.CompilerParams(
            dimension_semantics=("parallel", "parallel"),
            vmem_limit_bytes=vmem_limit,
        ),
    )(x, w)

    if B_pad != B or O_pad != O:
        out = out[:B, :O]
    return out


# ---------------------------------------------------------------------------
# Parameter init + full forward (dropout=0.0, l1_decay=0.0 -> plain layer stack).
# ---------------------------------------------------------------------------
def init_gegenbauer_params(key, layers_hidden, degree):
    """Match GegenbauerKANLayer.__init__: coeffs ~ N(0, 1/(in_features*(degree+1))).

    torch stores (in, out, degree+1); here the layout is (degree+1, in, out) so each
    degree slice flattens to a lane-dense MXU RHS -- pure layout plumbing, same
    distribution.
    """
    params = []
    for in_f, out_f in zip(layers_hidden[:-1], layers_hidden[1:]):
        key, k = jax.random.split(key)
        std = 1.0 / (in_f * (degree + 1))
        params.append(std * jax.random.normal(k, (degree + 1, in_f, out_f),
                                              jnp.float32))
    return params


@functools.partial(jax.jit, static_argnames=("degree", "alpha"))
def gegenbauer_kan_forward(x, params, *, degree, alpha):
    x = x.reshape(-1, params[0].shape[1])
    for coeffs in params:
        x = gegenbauer_kan_layer(x, coeffs, degree=degree, alpha=alpha)
    return x


# ---------------------------------------------------------------------------
# Pure-JAX reference (matches the torch forward) + self-test.
# ---------------------------------------------------------------------------
def _layer_ref(x, coeffs, degree, alpha):
    x = jnp.tanh(x)
    polys = [jnp.ones_like(x)]
    if degree >= 1:
        polys.append(2.0 * alpha * x)
    for n in range(1, degree):
        polys.append(((2.0 * (n + alpha)) * x * polys[n]
                      - (n + 2.0 * alpha - 1.0) * polys[n - 1]) / (n + 1.0))
    g = jnp.stack(polys, axis=0)                       # (degree+1, B, I)
    return jnp.einsum('dbi,dio->bo', g, coeffs)


if __name__ == "__main__":
    # Small shapes consistent with the module: x is (batch, layers_hidden[0]).
    layers_hidden = [32, 64, 16]
    batch = 16
    degree = 3
    alpha = 1.0

    root = jax.random.PRNGKey(0)
    k_x, k_p = jax.random.split(root)
    x = jax.random.normal(k_x, (batch, layers_hidden[0]), jnp.float32)
    params = init_gegenbauer_params(k_p, layers_hidden, degree)

    y = gegenbauer_kan_forward(x, params, degree=degree, alpha=alpha)
    jax.block_until_ready(y)

    ref = x
    for c in params:
        ref = _layer_ref(ref, c, degree, alpha)

    assert y.shape == (batch, layers_hidden[-1]), y.shape
    assert bool(jnp.all(jnp.isfinite(y)))
    # bf16 MXU operands / bf16 weights vs. the f32 reference -> loose tolerance.
    assert bool(jnp.allclose(y, ref, atol=2e-2, rtol=2e-2)), float(
        jnp.max(jnp.abs(y - ref)))
    print("KERNEL_OK")
</pallas_src>

<mosaic_0001>
module attributes {stable_mosaic.version = 11 : i64} {
  func.func @_gegenbauer_layer_kernel(%arg0: i32, %arg1: i32, %arg2: memref<16x32xf32, #tpu.memory_space<vmem>>, %arg3: memref<128x64xbf16, #tpu.memory_space<vmem>>, %arg4: memref<16x64xf32, #tpu.memory_space<vmem>>, %arg5: memref<16x128xf32, #tpu.memory_space<vmem>>) attributes {dimension_semantics = [#tpu.dimension_semantics<parallel>, #tpu.dimension_semantics<parallel>], iteration_bounds = array<i64: 1, 1>, scalar_prefetch = 0 : i64, scratch_operands = 1 : i64, tpu.core_type = #tpu.core_type<tc>, window_params = [{transform_indices = @transform_0, window_bounds = array<i64: 16, 32>}, {transform_indices = @transform_1, window_bounds = array<i64: 128, 64>}, {transform_indices = @transform_2, window_bounds = array<i64: 16, 64>}]} {
    %c0 = arith.constant 0 : index
    %c0_0 = arith.constant 0 : index
    %0 = vector.load %arg2[%c0, %c0_0] : memref<16x32xf32, #tpu.memory_space<vmem>>, vector<16x32xf32>
    %1 = math.tanh %0 : vector<16x32xf32>
    %cst = arith.constant 1.000000e+00 : f32
    %2 = vector.broadcast %cst : f32 to vector<16x32xf32>
    %c0_1 = arith.constant 0 : index
    %c0_2 = arith.constant 0 : index
    %3 = vector.load %arg5[%c0_1, %c0_2] : memref<16x128xf32, #tpu.memory_space<vmem>>, vector<16x32xf32>
    tpu.vector_store %arg5[%c0_1, %c0_2], %2 {strides = array<i32>} : memref<16x128xf32, #tpu.memory_space<vmem>>, vector<16x32xf32>,
    %cst_3 = arith.constant 2.000000e+00 : f32
    %4 = vector.broadcast %cst_3 : f32 to vector<16x32xf32>
    %5 = arith.mulf %4, %1 : vector<16x32xf32>
    %c0_4 = arith.constant 0 : index
    %c32 = arith.constant 32 : index
    %6 = vector.load %arg5[%c0_4, %c32] : memref<16x128xf32, #tpu.memory_space<vmem>>, vector<16x32xf32>
    tpu.vector_store %arg5[%c0_4, %c32], %5 {strides = array<i32>} : memref<16x128xf32, #tpu.memory_space<vmem>>, vector<16x32xf32>,
    %cst_5 = arith.constant 4.000000e+00 : f32
    %7 = vector.broadcast %cst_5 : f32 to vector<16x32xf32>
    %8 = arith.mulf %7, %1 : vector<16x32xf32>
    %9 = arith.mulf %8, %5 : vector<16x32xf32>
    %cst_6 = arith.constant 2.000000e+00 : f32
    %10 = vector.broadcast %cst_6 : f32 to vector<16x32xf32>
    %11 = arith.mulf %10, %2 : vector<16x32xf32>
    %12 = arith.subf %9, %11 : vector<16x32xf32>
    %cst_7 = arith.constant 5.000000e-01 : f32
    %13 = vector.broadcast %cst_7 : f32 to vector<16x32xf32>
    %14 = arith.mulf %12, %13 : vector<16x32xf32>
    %c0_8 = arith.constant 0 : index
    %c64 = arith.constant 64 : index
    %15 = vector.load %arg5[%c0_8, %c64] : memref<16x128xf32, #tpu.memory_space<vmem>>, vector<16x32xf32>
    tpu.vector_store %arg5[%c0_8, %c64], %14 {strides = array<i32>} : memref<16x128xf32, #tpu.memory_space<vmem>>, vector<16x32xf32>,
    %cst_9 = arith.constant 6.000000e+00 : f32
    %16 = vector.broadcast %cst_9 : f32 to vector<16x32xf32>
    %17 = arith.mulf %16, %1 : vector<16x32xf32>
    %18 = arith.mulf %17, %14 : vector<16x32xf32>
    %cst_10 = arith.constant 3.000000e+00 : f32
    %19 = vector.broadcast %cst_10 : f32 to vector<16x32xf32>
    %20 = arith.mulf %19, %5 : vector<16x32xf32>
    %21 = arith.subf %18, %20 : vector<16x32xf32>
    %cst_11 = arith.constant 0.333333343 : f32
    %22 = vector.broadcast %cst_11 : f32 to vector<16x32xf32>
    %23 = arith.mulf %21, %22 : vector<16x32xf32>
    %c0_12 = arith.constant 0 : index
    %c96 = arith.constant 96 : index
    %24 = vector.load %arg5[%c0_12, %c96] : memref<16x128xf32, #tpu.memory_space<vmem>>, vector<16x32xf32>
    tpu.vector_store %arg5[%c0_12, %c96], %23 {strides = array<i32>} : memref<16x128xf32, #tpu.memory_space<vmem>>, vector<16x32xf32>,
    %c0_13 = arith.constant 0 : index
    %c0_14 = arith.constant 0 : index
    %25 = vector.load %arg5[%c0_13, %c0_14] : memref<16x128xf32, #tpu.memory_space<vmem>>, vector<16x128xf32>
    %26 = arith.truncf %25 : vector<16x128xf32> to vector<16x128xbf16>
    %c0_15 = arith.constant 0 : index
    %c0_16 = arith.constant 0 : index
    %27 = vector.load %arg3[%c0_15, %c0_16] : memref<128x64xbf16, #tpu.memory_space<vmem>>, vector<128x64xbf16>
    %cst_17 = arith.constant dense<0.000000e+00> : vector<16x64xf32>
    %28 = tpu.matmul %26, %27, %cst_17 {dimension_numbers = #tpu.dot_dimension_numbers<[1], [0], [0], [1], [0, 0, 1, 1], [], []>} : vector<16x128xbf16>, vector<128x64xbf16>, vector<16x64xf32> -> vector<16x64xf32>
    %c0_18 = arith.constant 0 : index
    %c0_19 = arith.constant 0 : index
    %29 = vector.load %arg4[%c0_18, %c0_19] : memref<16x64xf32, #tpu.memory_space<vmem>>, vector<16x64xf32>
    tpu.vector_store %arg4[%c0_18, %c0_19], %28 {strides = array<i32>} : memref<16x64xf32, #tpu.memory_space<vmem>>, vector<16x64xf32>,
    return
  }
  func.func @transform_0(%arg0: i32, %arg1: i32) -> (i32, i32) {
    %c0_i32 = arith.constant 0 : i32
    %c0_i32_0 = arith.constant 0 : i32
    return %arg1, %c0_i32 : i32, i32
  }
  func.func @transform_1(%arg0: i32, %arg1: i32) -> (i32, i32) {
    %c0_i32 = arith.constant 0 : i32
    %c0_i32_0 = arith.constant 0 : i32
    return %c0_i32, %arg0 : i32, i32
  }
  func.func @transform_2(%arg0: i32, %arg1: i32) -> (i32, i32) {
    %c0_i32 = arith.constant 0 : i32
    return %arg1, %arg0 : i32, i32
  }
}

module attributes {stable_mosaic.version = 11 : i64} {
  func.func @_gegenbauer_layer_kernel(%arg0: i32, %arg1: i32, %arg2: memref<16x64xf32, #tpu.memory_space<vmem>>, %arg3: memref<256x16xbf16, #tpu.memory_space<vmem>>, %arg4: memref<16x16xf32, #tpu.memory_space<vmem>>, %arg5: memref<16x256xf32, #tpu.memory_space<vmem>>) attributes {dimension_semantics = [#tpu.dimension_semantics<parallel>, #tpu.dimension_semantics<parallel>], iteration_bounds = array<i64: 1, 1>, scalar_prefetch = 0 : i64, scratch_operands = 1 : i64, tpu.core_type = #tpu.core_type<tc>, window_params = [{transform_indices = @transform_0, window_bounds = array<i64: 16, 64>}, {transform_indices = @transform_1, window_bounds = array<i64: 256, 16>}, {transform_indices = @transform_2, window_bounds = array<i64: 16, 16>}]} {
    %c0 = arith.constant 0 : index
    %c0_0 = arith.constant 0 : index
    %0 = vector.load %arg2[%c0, %c0_0] : memref<16x64xf32, #tpu.memory_space<vmem>>, vector<16x64xf32>
    %1 = math.tanh %0 : vector<16x64xf32>
    %cst = arith.constant 1.000000e+00 : f32
    %2 = vector.broadcast %cst : f32 to vector<16x64xf32>
    %c0_1 = arith.constant 0 : index
    %c0_2 = arith.constant 0 : index
    %3 = vector.load %arg5[%c0_1, %c0_2] : memref<16x256xf32, #tpu.memory_space<vmem>>, vector<16x64xf32>
    tpu.vector_store %arg5[%c0_1, %c0_2], %2 {strides = array<i32>} : memref<16x256xf32, #tpu.memory_space<vmem>>, vector<16x64xf32>,
    %cst_3 = arith.constant 2.000000e+00 : f32
    %4 = vector.broadcast %cst_3 : f32 to vector<16x64xf32>
    %5 = arith.mulf %4, %1 : vector<16x64xf32>
    %c0_4 = arith.constant 0 : index
    %c64 = arith.constant 64 : index
    %6 = vector.load %arg5[%c0_4, %c64] : memref<16x256xf32, #tpu.memory_space<vmem>>, vector<16x64xf32>
    tpu.vector_store %arg5[%c0_4, %c64], %5 {strides = array<i32>} : memref<16x256xf32, #tpu.memory_space<vmem>>, vector<16x64xf32>,
    %cst_5 = arith.constant 4.000000e+00 : f32
    %7 = vector.broadcast %cst_5 : f32 to vector<16x64xf32>
    %8 = arith.mulf %7, %1 : vector<16x64xf32>
    %9 = arith.mulf %8, %5 : vector<16x64xf32>
    %cst_6 = arith.constant 2.000000e+00 : f32
    %10 = vector.broadcast %cst_6 : f32 to vector<16x64xf32>
    %11 = arith.mulf %10, %2 : vector<16x64xf32>
    %12 = arith.subf %9, %11 : vector<16x64xf32>
    %cst_7 = arith.constant 5.000000e-01 : f32
    %13 = vector.broadcast %cst_7 : f32 to vector<16x64xf32>
    %14 = arith.mulf %12, %13 : vector<16x64xf32>
    %c0_8 = arith.constant 0 : index
    %c128 = arith.constant 128 : index
    %15 = vector.load %arg5[%c0_8, %c128] : memref<16x256xf32, #tpu.memory_space<vmem>>, vector<16x64xf32>
    tpu.vector_store %arg5[%c0_8, %c128], %14 {strides = array<i32>} : memref<16x256xf32, #tpu.memory_space<vmem>>, vector<16x64xf32>,
    %cst_9 = arith.constant 6.000000e+00 : f32
    %16 = vector.broadcast %cst_9 : f32 to vector<16x64xf32>
    %17 = arith.mulf %16, %1 : vector<16x64xf32>
    %18 = arith.mulf %17, %14 : vector<16x64xf32>
    %cst_10 = arith.constant 3.000000e+00 : f32
    %19 = vector.broadcast %cst_10 : f32 to vector<16x64xf32>
    %20 = arith.mulf %19, %5 : vector<16x64xf32>
    %21 = arith.subf %18, %20 : vector<16x64xf32>
    %cst_11 = arith.constant 0.333333343 : f32
    %22 = vector.broadcast %cst_11 : f32 to vector<16x64xf32>
    %23 = arith.mulf %21, %22 : vector<16x64xf32>
    %c0_12 = arith.constant 0 : index
    %c192 = arith.constant 192 : index
    %24 = vector.load %arg5[%c0_12, %c192] : memref<16x256xf32, #tpu.memory_space<vmem>>, vector<16x64xf32>
    tpu.vector_store %arg5[%c0_12, %c192], %23 {strides = array<i32>} : memref<16x256xf32, #tpu.memory_space<vmem>>, vector<16x64xf32>,
    %c0_13 = arith.constant 0 : index
    %c0_14 = arith.constant 0 : index
    %25 = vector.load %arg5[%c0_13, %c0_14] : memref<16x256xf32, #tpu.memory_space<vmem>>, vector<16x256xf32>
    %26 = arith.truncf %25 : vector<16x256xf32> to vector<16x256xbf16>
    %c0_15 = arith.constant 0 : index
    %c0_16 = arith.constant 0 : index
    %27 = vector.load %arg3[%c0_15, %c0_16] : memref<256x16xbf16, #tpu.memory_space<vmem>>, vector<256x16xbf16>
    %cst_17 = arith.constant dense<0.000000e+00> : vector<16x16xf32>
    %28 = tpu.matmul %26, %27, %cst_17 {dimension_numbers = #tpu.dot_dimension_numbers<[1], [0], [0], [1], [0, 0, 1, 1], [], []>} : vector<16x256xbf16>, vector<256x16xbf16>, vector<16x16xf32> -> vector<16x16xf32>
    %c0_18 = arith.constant 0 : index
    %c0_19 = arith.constant 0 : index
    %29 = vector.load %arg4[%c0_18, %c0_19] : memref<16x16xf32, #tpu.memory_space<vmem>>, vector<16x16xf32>
    tpu.vector_store %arg4[%c0_18, %c0_19], %28 {strides = array<i32>} : memref<16x16xf32, #tpu.memory_space<vmem>>, vector<16x16xf32>,
    return
  }
  func.func @transform_0(%arg0: i32, %arg1: i32) -> (i32, i32) {
    %c0_i32 = arith.constant 0 : i32
    %c0_i32_0 = arith.constant 0 : i32
    return %arg1, %c0_i32 : i32, i32
  }
  func.func @transform_1(%arg0: i32, %arg1: i32) -> (i32, i32) {
    %c0_i32 = arith.constant 0 : i32
    %c0_i32_0 = arith.constant 0 : i32
    return %c0_i32, %arg0 : i32, i32
  }
  func.func @transform_2(%arg0: i32, %arg1: i32) -> (i32, i32) {
    %c0_i32 = arith.constant 0 : i32
    return %arg1, %arg0 : i32, i32
  }
}

</mosaic_0001>

<llo_original>
// kernel: gegenbauer_kan_forward.3
$region0: #{gegenbauer_kan_forward.3}
  #allocation0 [shape = 'u32[]', space=smem, size = 0x4, offset = 0x4, fixed_abs, tag = 'smem constant byte address 0x4 - core index']
  #allocation1 [shape = 'u32[144,128]{1,0:T(1,128)}', space=vmem, size = 0x12000, scoped, tag = 'internal scratch']
  #allocation2 [shape = 'f32[16,256]{1,0:T(8,128)}', space=vmem, size = 0x4000, scoped, tag = 'scratch operand']
  %s0 = inlined_call_operand.vmem [shape: f32[16,64], index: 0, kind: input, shape index: {}]
  %s1 = inlined_call_operand.vmem [shape: bf16[256,16], index: 1, kind: input, shape index: {}]
  %s2 = inlined_call_operand.hbm [shape: f32[16,16], index: 2, kind: output, shape index: {}]
  %s3 = sld [smem:[#allocation0]]
  $region18: #{gegenbauer_kan_forward.3} parent=0
    _
  %s5 = ssub.s32 1, %s3
  %s6 = scalar_select 0, %s5, %s3
  $region1: #{gegenbauer_kan_forward.3} parent=0
    #allocation3 [shape = 'u8[8192]{0}', space=vmem, size = 0x2000, scoped, tag = 'output window, operand 0, single buffered']
    #allocation4 [shape = 's32[1]{0}', space=sflag, size = 0x4, scoped, tag = 'scoped memory for gegenbauer_kan_forward.3']
    %7 = vsyncpa [#allocation4], 0
    // Predicated region
    $region2: #{gegenbauer_kan_forward.3} parent=1 // pred_check
      _
    $region3: #{gegenbauer_kan_forward.3} parent=1 // pred_check_branch
      %9 = sbr.rel (0) target = $region5
    $region4: #{gegenbauer_kan_forward.3} parent=1 // pred_region
      _
    $region5: #{gegenbauer_kan_forward.3} parent=1 // pred_fallthru
      _
    // Predicated region
    $region6: #{gegenbauer_kan_forward.3} parent=1 // pred_check
      _
    $region7: #{gegenbauer_kan_forward.3} parent=1 // pred_check_branch
      %11 = sbr.rel (0) target = $region9
    $region8: #{gegenbauer_kan_forward.3} parent=1 // pred_region
      _
    $region9: #{gegenbauer_kan_forward.3} parent=1 // pred_fallthru
      _
    %v13 = vld [vmem:[%s0] sm:$0xff]
    %v14 = vld [vmem:[%s0 + $0x8] sm:$0xff]
    %v15 = vtanh.pop %v13
    %v16 = vtanh.pop %v14
    %vm17 = vcmask 523264
    %18 = vst.msk [vmem:[#allocation2] sm:$0xff] %vm17, 1.0
    %19 = vst.msk [vmem:[#allocation2 + $0x10] sm:$0xff] %vm17, 1.0
    %v20 = vmul.f32 %v15, 2.0
    %v21 = vmul.f32 %v16, 2.0
    %24 = vrot.lane.b32.xlu0 %v20, 64
    %v25 = vpop.permute.xlu0 %24
    %26 = vrot.lane.b32.xlu0 %v21, 64
    %v27 = vpop.permute.xlu0 %26
    %vm30 = vcmask 1048064
    %31 = vst.msk [vmem:[#allocation2] sm:$0xff] %vm30, %v25
    %32 = vst.msk [vmem:[#allocation2 + $0x10] sm:$0xff] %vm30, %v27
    %v33 = vmul.f32 %v15, 4.0
    %v34 = vmul.f32 %v16, 4.0
    %v35 = vmul.f32 %v33, %v20
    %v36 = vmul.f32 %v34, %v21
    %v37 = vsub.f32 %v35, 2.0
    %v38 = vsub.f32 %v36, 2.0
    %v39 = vmul.f32 %v37, 0.5
    %v40 = vmul.f32 %v38, 0.5
    %41 = vst.msk [vmem:[#allocation2 + $0x8] sm:$0xff] %vm17, %v39
    %42 = vst.msk [vmem:[#allocation2 + $0x18] sm:$0xff] %vm17, %v40
    %v43 = vmul.f32 %v15, 6.0
    %v44 = vmul.f32 %v16, 6.0
    %v45 = vmul.f32 %v43, %v39
    %v46 = vmul.f32 %v44, %v40
    %v47 = vmul.f32 %v20, 3.0
    %v48 = vmul.f32 %v21, 3.0
    %v49 = vsub.f32 %v45, %v47
    %v50 = vsub.f32 %v46, %v48
    %v51 = vmul.f32 %v49, 0.33333334
    %v52 = vmul.f32 %v50, 0.33333334
    %55 = vrot.lane.b32.xlu0 %v51, 64
    %v56 = vpop.permute.xlu0 %55
    %57 = vrot.lane.b32.xlu0 %v52, 64
    %v58 = vpop.permute.xlu0 %57
    %61 = vst.msk [vmem:[#allocation2 + $0x8] sm:$0xff] %vm30, %v56
    %62 = vst.msk [vmem:[#allocation2 + $0x18] sm:$0xff] %vm30, %v58
    %v63 = vld [vmem:[#allocation2] sm:$0xff]
    %v64 = vld [vmem:[#allocation2 + $0x8] sm:$0xff]
    %v65 = vld [vmem:[#allocation2 + $0x10] sm:$0xff]
    %v66 = vld [vmem:[#allocation2 + $0x18] sm:$0xff]
    %v67 = vpack.c.bf16 %v65, %v63
    %v68 = vpack.c.bf16 %v66, %v64
    %v69 = vld [vmem:[%s1] sm:$0xf]
    %v70 = vld [vmem:[%s1 + $0x4] sm:$0xf]
    %v71 = vld [vmem:[%s1 + $0x8] sm:$0xf]
    %v72 = vld [vmem:[%s1 + $0xc] sm:$0xf]
    %v73 = vld [vmem:[%s1 + $0x10] sm:$0xf]
    %v74 = vld [vmem:[%s1 + $0x14] sm:$0xf]
    %v75 = vld [vmem:[%s1 + $0x18] sm:$0xf]
    %v76 = vld [vmem:[%s1 + $0x1c] sm:$0xf]
    %v77 = vld [vmem:[%s1 + $0x20] sm:$0xf]
    %v78 = vld [vmem:[%s1 + $0x24] sm:$0xf]
    %v79 = vld [vmem:[%s1 + $0x28] sm:$0xf]
    %v80 = vld [vmem:[%s1 + $0x2c] sm:$0xf]
    %v81 = vld [vmem:[%s1 + $0x30] sm:$0xf]
    %v82 = vld [vmem:[%s1 + $0x34] sm:$0xf]
    %v83 = vld [vmem:[%s1 + $0x38] sm:$0xf]
    %v84 = vld [vmem:[%s1 + $0x3c] sm:$0xf]
    %v85 = vld [vmem:[%s1 + $0x40] sm:$0xf]
    %v86 = vld [vmem:[%s1 + $0x44] sm:$0xf]
    %v87 = vld [vmem:[%s1 + $0x48] sm:$0xf]
    %v88 = vld [vmem:[%s1 + $0x4c] sm:$0xf]
    %v89 = vld [vmem:[%s1 + $0x50] sm:$0xf]
    %v90 = vld [vmem:[%s1 + $0x54] sm:$0xf]
    %v91 = vld [vmem:[%s1 + $0x58] sm:$0xf]
    %v92 = vld [vmem:[%s1 + $0x5c] sm:$0xf]
    %v93 = vld [vmem:[%s1 + $0x60] sm:$0xf]
    %v94 = vld [vmem:[%s1 + $0x64] sm:$0xf]
    %v95 = vld [vmem:[%s1 + $0x68] sm:$0xf]
    %v96 = vld [vmem:[%s1 + $0x6c] sm:$0xf]
    %v97 = vld [vmem:[%s1 + $0x70] sm:$0xf]
    %v98 = vld [vmem:[%s1 + $0x74] sm:$0xf]
    %v99 = vld [vmem:[%s1 + $0x78] sm:$0xf]
    %v100 = vld [vmem:[%s1 + $0x7c] sm:$0xf]
    %v133 = vunpack.c.l.b16 %v69
    %v134 = vunpack.c.l.b16 %v70
    %v135 = vunpack.c.l.b16 %v71
    %v136 = vunpack.c.l.b16 %v72
    %v137 = vunpack.c.l.b16 %v73
    %v138 = vunpack.c.l.b16 %v74
    %v139 = vunpack.c.l.b16 %v75
    %v140 = vunpack.c.l.b16 %v76
    %v141 = vunpack.c.l.b16 %v77
    %v142 = vunpack.c.l.b16 %v78
    %v143 = vunpack.c.l.b16 %v79
    %v144 = vunpack.c.l.b16 %v80
    %v145 = vunpack.c.l.b16 %v81
    %v146 = vunpack.c.l.b16 %v82
    %v147 = vunpack.c.l.b16 %v83
    %v148 = vunpack.c.l.b16 %v84
    %v149 = vunpack.c.l.b16 %v85
    %v150 = vunpack.c.l.b16 %v86
    %v151 = vunpack.c.l.b16 %v87
    %v152 = vunpack.c.l.b16 %v88
    %v153 = vunpack.c.l.b16 %v89
    %v154 = vunpack.c.l.b16 %v90
    %v155 = vunpack.c.l.b16 %v91
    %v156 = vunpack.c.l.b16 %v92
    %v157 = vunpack.c.l.b16 %v93
    %v158 = vunpack.c.l.b16 %v94
    %v159 = vunpack.c.l.b16 %v95
    %v160 = vunpack.c.l.b16 %v96
    %v161 = vunpack.c.l.b16 %v97
    %v162 = vunpack.c.l.b16 %v98
    %v163 = vunpack.c.l.b16 %v99
    %v164 = vunpack.c.l.b16 %v100
    %v165 = vpack.c.b16 %v134, %v133
    %v166 = vpack.c.b16 %v136, %v135
    %v167 = vpack.c.b16 %v138, %v137
    %v168 = vpack.c.b16 %v140, %v139
    %v169 = vpack.c.b16 %v142, %v141
    %v170 = vpack.c.b16 %v144, %v143
    %v171 = vpack.c.b16 %v146, %v145
    %v172 = vpack.c.b16 %v148, %v147
    %v173 = vpack.c.b16 %v150, %v149
    %v174 = vpack.c.b16 %v152, %v151
    %v175 = vpack.c.b16 %v154, %v153
    %v176 = vpack.c.b16 %v156, %v155
    %v177 = vpack.c.b16 %v158, %v157
    %v178 = vpack.c.b16 %v160, %v159
    %v179 = vpack.c.b16 %v162, %v161
    %v180 = vpack.c.b16 %v164, %v163
    %197 = vmatprep.subr.bf16.mxu0 0
    %198 = vmatpush1.bf16.msra.mxu0 %v165
    %199 = vmatprep.subr.bf16.mxu0 0
    %200 = vmatpush1.bf16.msra.mxu0 %v166
    %201 = vmatprep.subr.bf16.mxu0 0
    %202 = vmatpush1.bf16.msra.mxu0 %v167
    %203 = vmatprep.subr.bf16.mxu0 0
    %204 = vmatpush1.bf16.msra.mxu0 %v168
    %205 = vmatprep.subr.bf16.mxu0 0
    %206 = vmatpush1.bf16.msra.mxu0 %v169
    %207 = vmatprep.subr.bf16.mxu0 0
    %208 = vmatpush1.bf16.msra.mxu0 %v170
    %209 = vmatprep.subr.bf16.mxu0 0
    %210 = vmatpush1.bf16.msra.mxu0 %v171
    %211 = vmatprep.subr.bf16.mxu0 0
    %212 = vmatpush1.bf16.msra.mxu0 %v172
    %213 = vmatprep.subr.bf16.mxu0 0
    %214 = vmatpush1.bf16.msra.mxu0 %v173
    %215 = vmatprep.subr.bf16.mxu0 0
    %216 = vmatpush1.bf16.msra.mxu0 %v174
    %217 = vmatprep.subr.bf16.mxu0 0
    %218 = vmatpush1.bf16.msra.mxu0 %v175
    %219 = vmatprep.subr.bf16.mxu0 0
    %220 = vmatpush1.bf16.msra.mxu0 %v176
    %221 = vmatprep.subr.bf16.mxu0 0
    %222 = vmatpush1.bf16.msra.mxu0 %v177
    %223 = vmatprep.subr.bf16.mxu0 0
    %224 = vmatpush1.bf16.msra.mxu0 %v178
    %225 = vmatprep.subr.bf16.mxu0 0
    %226 = vmatpush1.bf16.msra.mxu0 %v179
    %227 = vmatprep.subr.bf16.mxu0 0
    %228 = vmatpush1.bf16.msra.mxu0 %v180
    %229 = vmatprep.mubr.bf16.mxu0 %v68
    %230 = vmatmul.mubr.bf16.gmra.mrb[0].mxu0 %v67
    %v231 = vpop.f32.mrb[0].mxu0
    %v232 = vadd.f32 0.0, %v231
    %v233 = vpop.f32.mrb[0].mxu0
    %v234 = vpop.f32.mrb[0].mxu0
    %v235 = vadd.f32 0.0, %v234
    %v236 = vpop.f32.mrb[0].mxu0
    %237 = vdwg.mxu0
    %vm238 = vcmask 130048
    %239 = vst.msk [vmem:[#allocation3] sm:$0xff] %vm238, %v232
    %240 = vst.msk [vmem:[#allocation3 + $0x8] sm:$0xff] %vm238, %v235
    // Predicated region
    $region10: #{gegenbauer_kan_forward.3} parent=1 // pred_check
      _
    $region11: #{gegenbauer_kan_forward.3} parent=1 // pred_check_branch
      %242 = sbr.rel (0) target = $region13
    $region12: #{gegenbauer_kan_forward.3} parent=1 // pred_region
      %s244 = ssub.s32 256, 256
      %245 = vsyncadd [#allocation4], %s244
      %s246 = sshll.u32 [#allocation3], 4
      %s247 = int_to_ptr.vmem [resolvable:$true] %s246
      %252 = dma.vmem_to_hbm [thread:$0]  %s247, 256, %s2, [#allocation4], 128, 128, 8
    $region13: #{gegenbauer_kan_forward.3} parent=1 // pred_fallthru
      _
    // Predicated region
    $region14: #{gegenbauer_kan_forward.3} parent=1 // pred_check
      _
    $region15: #{gegenbauer_kan_forward.3} parent=1 // pred_check_branch
      %254 = sbr.rel (0) target = $region17
    $region16: #{gegenbauer_kan_forward.3} parent=1 // pred_region
      %255 = dma.done [#allocation4], 256
    $region17: #{gegenbauer_kan_forward.3} parent=1 // pred_fallthru
      _
    %256 = vsyncpa [#allocation4], 1

// kernel: gegenbauer_kan_forward.2
$region0: #{gegenbauer_kan_forward.2}
  #allocation0 [shape = 'u32[]', space=smem, size = 0x4, offset = 0x4, fixed_abs, tag = 'smem constant byte address 0x4 - core index']
  #allocation1 [shape = 'u32[144,128]{1,0:T(1,128)}', space=vmem, size = 0x12000, scoped, tag = 'internal scratch']
  #allocation2 [shape = 'f32[16,128]{1,0:T(8,128)}', space=vmem, size = 0x2000, scoped, tag = 'scratch operand']
  %s0 = inlined_call_operand.vmem [shape: f32[16,32], index: 0, kind: input, shape index: {}]
  %s1 = inlined_call_operand.vmem [shape: bf16[128,64], index: 1, kind: input, shape index: {}]
  %s2 = inlined_call_operand.vmem [shape: f32[16,64], index: 2, kind: output, shape index: {}]
  %s3 = sld [smem:[#allocation0]]
  $region18: #{gegenbauer_kan_forward.2} parent=0
    _
  %s5 = ssub.s32 1, %s3
  %s6 = scalar_select 0, %s5, %s3
  // Predicated region
  $region2: #{gegenbauer_kan_forward.2} parent=0 // pred_check
    _
  $region3: #{gegenbauer_kan_forward.2} parent=0 // pred_check_branch
    %8 = sbr.rel (0) target = $region5
  $region4: #{gegenbauer_kan_forward.2} parent=0 // pred_region
    _
  $region5: #{gegenbauer_kan_forward.2} parent=0 // pred_fallthru
    _
  // Predicated region
  $region6: #{gegenbauer_kan_forward.2} parent=0 // pred_check
    _
  $region7: #{gegenbauer_kan_forward.2} parent=0 // pred_check_branch
    %10 = sbr.rel (0) target = $region9
  $region8: #{gegenbauer_kan_forward.2} parent=0 // pred_region
    _
  $region9: #{gegenbauer_kan_forward.2} parent=0 // pred_fallthru
    _
  %v12 = vld [vmem:[%s0] sm:$0xff]
  %v13 = vld [vmem:[%s0 + $0x8] sm:$0xff]
  %v14 = vtanh.pop %v12
  %v15 = vtanh.pop %v13
  %vm16 = vcmask 261120
  %17 = vst.msk [vmem:[#allocation2] sm:$0xff] %vm16, 1.0
  %18 = vst.msk [vmem:[#allocation2 + $0x8] sm:$0xff] %vm16, 1.0
  %v19 = vmul.f32 %v14, 2.0
  %v20 = vmul.f32 %v15, 2.0
  %23 = vrot.lane.b32.xlu0 %v19, 32
  %v24 = vpop.permute.xlu0 %23
  %25 = vrot.lane.b32.xlu0 %v20, 32
  %v26 = vpop.permute.xlu0 %25
  %vm29 = vcmask 523520
  %30 = vst.msk [vmem:[#allocation2] sm:$0xff] %vm29, %v24
  %31 = vst.msk [vmem:[#allocation2 + $0x8] sm:$0xff] %vm29, %v26
  %v32 = vmul.f32 %v14, 4.0
  %v33 = vmul.f32 %v15, 4.0
  %v34 = vmul.f32 %v32, %v19
  %v35 = vmul.f32 %v33, %v20
  %v36 = vsub.f32 %v34, 2.0
  %v37 = vsub.f32 %v35, 2.0
  %v38 = vmul.f32 %v36, 0.5
  %v39 = vmul.f32 %v37, 0.5
  %42 = vrot.lane.b32.xlu0 %v38, 64
  %v43 = vpop.permute.xlu0 %42
  %44 = vrot.lane.b32.xlu0 %v39, 64
  %v45 = vpop.permute.xlu0 %44
  %vm48 = vcmask 785920
  %49 = vst.msk [vmem:[#allocation2] sm:$0xff] %vm48, %v43
  %50 = vst.msk [vmem:[#allocation2 + $0x8] sm:$0xff] %vm48, %v45
  %v51 = vmul.f32 %v14, 6.0
  %v52 = vmul.f32 %v15, 6.0
  %v53 = vmul.f32 %v51, %v38
  %v54 = vmul.f32 %v52, %v39
  %v55 = vmul.f32 %v19, 3.0
  %v56 = vmul.f32 %v20, 3.0
  %v57 = vsub.f32 %v53, %v55
  %v58 = vsub.f32 %v54, %v56
  %v59 = vmul.f32 %v57, 0.33333334
  %v60 = vmul.f32 %v58, 0.33333334
  %63 = vrot.lane.b32.xlu0 %v59, 96
  %v64 = vpop.permute.xlu0 %63
  %65 = vrot.lane.b32.xlu0 %v60, 96
  %v66 = vpop.permute.xlu0 %65
  %vm69 = vcmask 1048320
  %70 = vst.msk [vmem:[#allocation2] sm:$0xff] %vm69, %v64
  %71 = vst.msk [vmem:[#allocation2 + $0x8] sm:$0xff] %vm69, %v66
  %v72 = vld [vmem:[#allocation2] sm:$0xff]
  %v73 = vld [vmem:[#allocation2 + $0x8] sm:$0xff]
  %v74 = vpack.c.bf16 %v73, %v72
  %v75 = vld [vmem:[%s1] sm:$0xf]
  %v76 = vld [vmem:[%s1 + $0x4] sm:$0xf]
  %v77 = vld [vmem:[%s1 + $0x8] sm:$0xf]
  %v78 = vld [vmem:[%s1 + $0xc] sm:$0xf]
  %v79 = vld [vmem:[%s1 + $0x10] sm:$0xf]
  %v80 = vld [vmem:[%s1 + $0x14] sm:$0xf]
  %v81 = vld [vmem:[%s1 + $0x18] sm:$0xf]
  %v82 = vld [vmem:[%s1 + $0x1c] sm:$0xf]
  %v83 = vld [vmem:[%s1 + $0x20] sm:$0xf]
  %v84 = vld [vmem:[%s1 + $0x24] sm:$0xf]
  %v85 = vld [vmem:[%s1 + $0x28] sm:$0xf]
  %v86 = vld [vmem:[%s1 + $0x2c] sm:$0xf]
  %v87 = vld [vmem:[%s1 + $0x30] sm:$0xf]
  %v88 = vld [vmem:[%s1 + $0x34] sm:$0xf]
  %v89 = vld [vmem:[%s1 + $0x38] sm:$0xf]
  %v90 = vld [vmem:[%s1 + $0x3c] sm:$0xf]
  %v107 = vunpack.c.l.b16 %v75
  %v108 = vunpack.c.l.b16 %v76
  %v109 = vunpack.c.l.b16 %v77
  %v110 = vunpack.c.l.b16 %v78
  %v111 = vunpack.c.l.b16 %v79
  %v112 = vunpack.c.l.b16 %v80
  %v113 = vunpack.c.l.b16 %v81
  %v114 = vunpack.c.l.b16 %v82
  %v115 = vunpack.c.l.b16 %v83
  %v116 = vunpack.c.l.b16 %v84
  %v117 = vunpack.c.l.b16 %v85
  %v118 = vunpack.c.l.b16 %v86
  %v119 = vunpack.c.l.b16 %v87
  %v120 = vunpack.c.l.b16 %v88
  %v121 = vunpack.c.l.b16 %v89
  %v122 = vunpack.c.l.b16 %v90
  %v123 = vpack.c.b16 %v108, %v107
  %v124 = vpack.c.b16 %v110, %v109
  %v125 = vpack.c.b16 %v112, %v111
  %v126 = vpack.c.b16 %v114, %v113
  %v127 = vpack.c.b16 %v116, %v115
  %v128 = vpack.c.b16 %v118, %v117
  %v129 = vpack.c.b16 %v120, %v119
  %v130 = vpack.c.b16 %v122, %v121
  %139 = vmatprep.subr.bf16.mxu0 0
  %140 = vmatpush1.bf16.msra.mxu0 %v123
  %141 = vmatprep.subr.bf16.mxu0 0
  %142 = vmatpush1.bf16.msra.mxu0 %v124
  %143 = vmatprep.subr.bf16.mxu0 0
  %144 = vmatpush1.bf16.msra.mxu0 %v125
  %145 = vmatprep.subr.bf16.mxu0 0
  %146 = vmatpush1.bf16.msra.mxu0 %v126
  %147 = vmatprep.subr.bf16.mxu0 0
  %148 = vmatpush1.bf16.msra.mxu0 %v127
  %149 = vmatprep.subr.bf16.mxu0 0
  %150 = vmatpush1.bf16.msra.mxu0 %v128
  %151 = vmatprep.subr.bf16.mxu0 0
  %152 = vmatpush1.bf16.msra.mxu0 %v129
  %153 = vmatprep.subr.bf16.mxu0 0
  %154 = vmatpush1.bf16.msra.mxu0 %v130
  %155 = vmatprep.subr.bf16.mxu0 0
  %156 = vmatpush1.bf16.msra.mxu0 0
  %157 = vmatprep.subr.bf16.mxu0 0
  %158 = vmatpush1.bf16.msra.mxu0 0
  %159 = vmatprep.subr.bf16.mxu0 0
  %160 = vmatpush1.bf16.msra.mxu0 0
  %161 = vmatprep.subr.bf16.mxu0 0
  %162 = vmatpush1.bf16.msra.mxu0 0
  %163 = vmatprep.subr.bf16.mxu0 0
  %164 = vmatpush1.bf16.msra.mxu0 0
  %165 = vmatprep.subr.bf16.mxu0 0
  %166 = vmatpush1.bf16.msra.mxu0 0
  %167 = vmatprep.subr.bf16.mxu0 0
  %168 = vmatpush1.bf16.msra.mxu0 0
  %169 = vmatprep.subr.bf16.mxu0 0
  %170 = vmatpush1.bf16.msra.mxu0 0
  %171 = vmatprep.mubr.bf16.mxu0 0
  %172 = vmatmul.mubr.bf16.gmra.mrb[0].mxu0 %v74
  %v173 = vpop.f32.mrb[0].mxu0
  %v174 = vadd.f32 0.0, %v173
  %v175 = vpop.f32.mrb[0].mxu0
  %v176 = vpop.f32.mrb[0].mxu0
  %v177 = vadd.f32 0.0, %v176
  %v178 = vpop.f32.mrb[0].mxu0
  %179 = vdwg.mxu0
  %vm180 = vcmask 523264
  %181 = vst.msk [vmem:[%s2] sm:$0xff] %vm180, %v174
  %182 = vst.msk [vmem:[%s2 + $0x8] sm:$0xff] %vm180, %v177
  // Predicated region
  $region10: #{gegenbauer_kan_forward.2} parent=0 // pred_check
    _
  $region11: #{gegenbauer_kan_forward.2} parent=0 // pred_check_branch
    %184 = sbr.rel (0) target = $region13
  $region12: #{gegenbauer_kan_forward.2} parent=0 // pred_region
    _
  $region13: #{gegenbauer_kan_forward.2} parent=0 // pred_fallthru
    _
  // Predicated region
  $region14: #{gegenbauer_kan_forward.2} parent=0 // pred_check
    _
  $region15: #{gegenbauer_kan_forward.2} parent=0 // pred_check_branch
    %186 = sbr.rel (0) target = $region17
  $region16: #{gegenbauer_kan_forward.2} parent=0 // pred_region
    _
  $region17: #{gegenbauer_kan_forward.2} parent=0 // pred_fallthru
    _

</llo_original>
